<compile_context>
chip_gen: v6e
topology: v6e:2x2x1
jax: 0.10.0
libtpu: 0.0.40
codegen_flags: <defaults>
</compile_context>

<pallas_src>
import functools

import jax
import jax.numpy as jnp
from jax.experimental import pallas as pl
from jax.experimental.pallas import tpu as pltpu

BN_EPS = 1e-5
_VMEM_LIMIT_BYTES = 32 * 1024 * 1024   # explicit scoped-VMEM request (safe on v5e/v6e/v7x)


def _tile_byte_budget():
    """Per-buffer tile budget in bytes, VMEM-aware (v7x has half the VMEM of v5e/v6e)."""
    cap = None
    try:
        cap = pltpu.get_tpu_info().vmem_capacity_bytes
    except Exception:
        cap = None
    if not cap:
        cap = 64 * 1024 * 1024          # conservative default: v7x physical per-TC VMEM
    # Pass 2 keeps ~4 tile-sized buffers live (double-buffered input + output);
    # keep that comfortably inside the 32 MiB scoped-VMEM limit we request.
    return max(1 << 20, min(4 << 20, cap // 16))


def _choose_fold(n, l):
    """Smallest k with n % k == 0 and (k*l) % 128 == 0 (lane-dense folded view)."""
    for k in range(1, 33):
        if n % k == 0 and (k * l) % 128 == 0:
            return k
    return 1                            # fall back to unfolded (still full-dim blocks)


def _choose_tile_rows(num_rows, row_bytes, budget_bytes):
    rows = max(8, budget_bytes // row_bytes)
    rows = (rows // 8) * 8              # sublane-aligned
    if num_rows <= rows:
        return num_rows                 # single block == full array dim (always legal)
    return rows


def _conv5(params_ref, x):
    """Fused 5-tap conv (== Conv1d(1,1,3) applied twice) on a full-width tile.

    Rolls run on the XLU and keep the tile lane-dense.  Only the trailing 4
    columns of each length-L segment are invalid (wrap-around / cross-segment
    contamination); callers mask or never emit those columns.
    """
    w = x.shape[1]
    t0 = params_ref[0]
    t1 = params_ref[1]
    t2 = params_ref[2]
    t3 = params_ref[3]
    t4 = params_ref[4]
    cb = params_ref[5]
    # pltpu.roll(x, w - j) == shift-left by j (jnp.roll convention).
    h = t0 * x + cb
    h += t1 * pltpu.roll(x, shift=w - 1, axis=1)
    h += t2 * pltpu.roll(x, shift=w - 2, axis=1)
    h += t3 * pltpu.roll(x, shift=w - 3, axis=1)
    h += t4 * pltpu.roll(x, shift=w - 4, axis=1)
    return h


def _stats_kernel(params_ref, x_ref, stats_ref, *, seg_len, seg_out, k,
                  n_valid_rows, rows_ragged):
    """Pass 1: fused conv + per-tile sum / sum-of-squares partials (BN batch stats)."""
    x = x_ref[...]                              # (tile_r, k*seg_len)
    tr, w = x.shape
    h = _conv5(params_ref, x)

    # Per-segment column validity: k unrolled range-compares (cheap VALU filler
    # under a mem-bound roofline; no integer mod/div needed).
    col = jax.lax.broadcasted_iota(jnp.int32, (tr, w), 1)
    valid = col < 0                             # all-False
    for s in range(k):
        lo = s * seg_len
        valid = valid | ((col >= lo) & (col < lo + seg_out))
    if rows_ragged:                             # only the last tile can read OOB rows
        row = jax.lax.broadcasted_iota(jnp.int32, (tr, w), 0) + pl.program_id(0) * tr
        valid = valid & (row < n_valid_rows)
    # jnp.where is a select, so OOB garbage (even NaN) never pollutes the sums.
    hm = jnp.where(valid, h, 0.0)

    # TODO(synk): plain f32 E[h^2]-E[h]^2 loses precision for very large N*L or
    # |mean| >> std; a mean-shifted / hierarchical accumulation would fix it.
    s_sum = jnp.sum(hm)
    s_sq = jnp.sum(hm * hm)

    # Per-tile partials in lanes 0 / 1 of sublane 0 of this tile's (8, 128)
    # block (everything else zero, so a plain sum in the wrapper combines them).
    sub = jax.lax.broadcasted_iota(jnp.int32, (8, 128), 0)
    lane = jax.lax.broadcasted_iota(jnp.int32, (8, 128), 1)
    vals = jnp.where(lane == 0, s_sum, jnp.where(lane == 1, s_sq, 0.0))
    stats_ref[...] = jnp.where(sub == 0, vals, 0.0)


def _normalize_kernel(params_ref, x_ref, out_ref, *, seg_len, seg_out, k):
    """Pass 2: recompute fused conv, apply y = h*scale + shift, emit compact output."""
    x = x_ref[...]
    h = _conv5(params_ref, x)
    scale = params_ref[6]
    shift = params_ref[7]
    y = h * scale + shift
    if k == 1:
        out_ref[...] = y[:, :seg_out]
    else:
        # Compact the k valid L_out-wide segments so the output block is the
        # final lane-dense layout (no wrapper-side slice / copy needed).
        parts = [y[:, s * seg_len: s * seg_len + seg_out] for s in range(k)]
        out_ref[...] = jnp.concatenate(parts, axis=1)


def _model_forward_impl(x_ncl, conv_w, conv_b, bn_gamma, bn_beta):
    """Equivalent of Model.forward: bn(conv1(conv1(x))) in training mode.

    x_ncl: (N, 1, L) float32; conv_w: (3,); conv_b / bn_gamma / bn_beta scalars.
    Returns (N, 1, L - 4) float32.
    """
    n, c, l = x_ncl.shape
    assert c == 1, "Model uses Conv1d(1, 1, 3): single input channel expected"
    assert l >= 5, "need L >= 5 for two valid 3-tap convolutions"
    l_out = l - 4

    x_nl = x_ncl[:, 0, :].astype(jnp.float32)

    # Algebraically fuse conv1(conv1(.)) into one 5-tap conv (8 scalars in SMEM).
    w0 = conv_w[0].astype(jnp.float32)
    w1 = conv_w[1].astype(jnp.float32)
    w2 = conv_w[2].astype(jnp.float32)
    cb = jnp.asarray(conv_b, jnp.float32)
    t0 = w0 * w0
    t1 = 2.0 * w0 * w1
    t2 = 2.0 * w0 * w2 + w1 * w1
    t3 = 2.0 * w1 * w2
    t4 = w2 * w2
    cb_eff = cb * (w0 + w1 + w2) + cb

    # Lane-dense folded view: (N, L) -> (N/k, k*L); contiguous reshape == free.
    k = _choose_fold(n, l)
    r = n // k
    width = k * l
    x_view = x_nl.reshape(r, width)

    tile_r = _choose_tile_rows(r, width * 4, _tile_byte_budget())
    grid_r = -(-r // tile_r)
    rows_ragged = (r % tile_r) != 0

    zero = jnp.float32(0.0)
    params1 = jnp.stack([t0, t1, t2, t3, t4, cb_eff, zero, zero])

    # ---- Pass 1: streaming sum / sumsq of conv(conv(x)) (global BN stats) ----
    stats = pl.pallas_call(
        functools.partial(_stats_kernel, seg_len=l, seg_out=l_out, k=k,
                          n_valid_rows=r, rows_ragged=rows_ragged),
        out_shape=jax.ShapeDtypeStruct((grid_r * 8, 128), jnp.float32),
        grid=(grid_r,),
        in_specs=[
            pl.BlockSpec(memory_space=pltpu.SMEM),            # 8 fused-conv scalars
            pl.BlockSpec((tile_r, width), lambda i: (i, 0)),  # folded x tile
        ],
        out_specs=pl.BlockSpec((8, 128), lambda i: (i, 0)),
        compiler_params=pltpu.CompilerParams(
            dimension_semantics=("parallel",),
            vmem_limit_bytes=_VMEM_LIMIT_BYTES),
    )(params1, x_view)

    count = jnp.float32(n * l_out)                   # true element count
    total = jnp.sum(stats[:, 0])
    total_sq = jnp.sum(stats[:, 1])
    mean = total / count
    var = jnp.maximum(total_sq / count - mean * mean, 0.0)   # biased variance
    inv_std = jax.lax.rsqrt(var + BN_EPS)
    scale = jnp.asarray(bn_gamma, jnp.float32) * inv_std
    shift = jnp.asarray(bn_beta, jnp.float32) - mean * scale

    params2 = jnp.stack([t0, t1, t2, t3, t4, cb_eff, scale, shift])

    # ---- Pass 2: recompute the cheap conv, apply affine BN, write final shape ----
    y_view = pl.pallas_call(
        functools.partial(_normalize_kernel, seg_len=l, seg_out=l_out, k=k),
        out_shape=jax.ShapeDtypeStruct((r, k * l_out), jnp.float32),
        grid=(grid_r,),
        in_specs=[
            pl.BlockSpec(memory_space=pltpu.SMEM),            # scalars incl. scale/shift
            pl.BlockSpec((tile_r, width), lambda i: (i, 0)),  # folded x tile
        ],
        out_specs=pl.BlockSpec((tile_r, k * l_out), lambda i: (i, 0)),
        compiler_params=pltpu.CompilerParams(
            dimension_semantics=("parallel",),
            vmem_limit_bytes=_VMEM_LIMIT_BYTES),
    )(params2, x_view)

    # (N/k, k*L_out) row-major is exactly (N, L_out) row-major: reshape is free.
    return y_view.reshape(n, l_out)[:, None, :]


model_forward = jax.jit(_model_forward_impl)


def _reference(x_ncl, conv_w, conv_b, bn_gamma, bn_beta):
    """Pure-JAX reference mirroring the PyTorch module (training-mode BN)."""
    x = x_ncl[:, 0, :]

    def conv(v):
        lo = v.shape[1] - 2
        return (conv_w[0] * v[:, 0:lo]
                + conv_w[1] * v[:, 1:lo + 1]
                + conv_w[2] * v[:, 2:lo + 2]
                + conv_b)

    h = conv(conv(x))
    mean = jnp.mean(h)
    var = jnp.mean((h - mean) ** 2)
    y = (h - mean) / jnp.sqrt(var + BN_EPS) * bn_gamma + bn_beta
    return y[:, None, :]


# TODO(synk): BatchNorm running_mean / running_var buffer updates (training
# side effect of the two bn() calls) are not modeled; they do not affect the
# returned tensor.

if __name__ == "__main__":
    key = jax.random.PRNGKey(0)

    # (N, C=1, L) input, consistent with Conv1d(1, 1, 3) + BatchNorm1d(1).
    N, L = 4, 32
    x = jax.random.normal(key, (N, 1, L), dtype=jnp.float32)

    # Deterministic synthetic parameters.
    conv_w = jnp.array([0.2, -0.35, 0.5], dtype=jnp.float32)
    conv_b = jnp.float32(0.05)
    bn_gamma = jnp.float32(0.8)
    bn_beta = jnp.float32(-0.1)

    out = jax.block_until_ready(model_forward(x, conv_w, conv_b, bn_gamma, bn_beta))
    ref = _reference(x, conv_w, conv_b, bn_gamma, bn_beta)
    assert out.shape == (N, 1, L - 4)
    assert jnp.allclose(out, ref, atol=1e-4, rtol=1e-4)

    # Second small case exercises the unfolded (k == 1) fallback path.
    N2, L2 = 5, 32
    x2 = jax.random.normal(jax.random.PRNGKey(1), (N2, 1, L2), dtype=jnp.float32)
    out2 = jax.block_until_ready(model_forward(x2, conv_w, conv_b, bn_gamma, bn_beta))
    ref2 = _reference(x2, conv_w, conv_b, bn_gamma, bn_beta)
    assert out2.shape == (N2, 1, L2 - 4)
    assert jnp.allclose(out2, ref2, atol=1e-4, rtol=1e-4)

    print("KERNEL_OK")
</pallas_src>

<mosaic_0001>
module attributes {stable_mosaic.version = 11 : i64} {
  func.func @_stats_kernel(%arg0: i32, %arg1: memref<8xf32, #tpu.memory_space<smem>>, %arg2: memref<1x128xf32, #tpu.memory_space<vmem>>, %arg3: memref<8x128xf32, #tpu.memory_space<vmem>>) attributes {dimension_semantics = [#tpu.dimension_semantics<parallel>], iteration_bounds = array<i64: 1>, scalar_prefetch = 0 : i64, scratch_operands = 0 : i64, tpu.core_type = #tpu.core_type<tc>, window_params = [{transform_indices = @transform_0, window_bounds = array<i64: 8>}, {transform_indices = @transform_1, window_bounds = array<i64: 1, 128>}, {transform_indices = @transform_2, window_bounds = array<i64: 8, 128>}]} {
    %c0 = arith.constant 0 : index
    %c0_0 = arith.constant 0 : index
    %0 = vector.load %arg2[%c0, %c0_0] : memref<1x128xf32, #tpu.memory_space<vmem>>, vector<1x128xf32>
    %c0_1 = arith.constant 0 : index
    %1 = memref.load %arg1[%c0_1] : memref<8xf32, #tpu.memory_space<smem>>
    %c1 = arith.constant 1 : index
    %2 = memref.load %arg1[%c1] : memref<8xf32, #tpu.memory_space<smem>>
    %c2 = arith.constant 2 : index
    %3 = memref.load %arg1[%c2] : memref<8xf32, #tpu.memory_space<smem>>
    %c3 = arith.constant 3 : index
    %4 = memref.load %arg1[%c3] : memref<8xf32, #tpu.memory_space<smem>>
    %c4 = arith.constant 4 : index
    %5 = memref.load %arg1[%c4] : memref<8xf32, #tpu.memory_space<smem>>
    %c5 = arith.constant 5 : index
    %6 = memref.load %arg1[%c5] : memref<8xf32, #tpu.memory_space<smem>>
    %7 = vector.broadcast %1 : f32 to vector<1x128xf32>
    %8 = arith.mulf %7, %0 : vector<1x128xf32>
    %9 = vector.broadcast %6 : f32 to vector<1x128xf32>
    %10 = arith.addf %8, %9 : vector<1x128xf32>
    %c127_i32 = arith.constant 127 : i32
    %11 = tpu.dynamic_rotate %0 by %c127_i32 dim 1 : vector<1x128xf32>, i32 -> vector<1x128xf32>
    %12 = vector.broadcast %2 : f32 to vector<1x128xf32>
    %13 = arith.mulf %12, %11 : vector<1x128xf32>
    %14 = arith.addf %10, %13 : vector<1x128xf32>
    %c126_i32 = arith.constant 126 : i32
    %15 = tpu.dynamic_rotate %0 by %c126_i32 dim 1 : vector<1x128xf32>, i32 -> vector<1x128xf32>
    %16 = vector.broadcast %3 : f32 to vector<1x128xf32>
    %17 = arith.mulf %16, %15 : vector<1x128xf32>
    %18 = arith.addf %14, %17 : vector<1x128xf32>
    %c125_i32 = arith.constant 125 : i32
    %19 = tpu.dynamic_rotate %0 by %c125_i32 dim 1 : vector<1x128xf32>, i32 -> vector<1x128xf32>
    %20 = vector.broadcast %4 : f32 to vector<1x128xf32>
    %21 = arith.mulf %20, %19 : vector<1x128xf32>
    %22 = arith.addf %18, %21 : vector<1x128xf32>
    %c124_i32 = arith.constant 124 : i32
    %23 = tpu.dynamic_rotate %0 by %c124_i32 dim 1 : vector<1x128xf32>, i32 -> vector<1x128xf32>
    %24 = vector.broadcast %5 : f32 to vector<1x128xf32>
    %25 = arith.mulf %24, %23 : vector<1x128xf32>
    %26 = arith.addf %22, %25 : vector<1x128xf32>
    %27 = tpu.iota {dimensions = array<i32: 1>} : vector<1x128xi32>
    %c0_i32 = arith.constant 0 : i32
    %28 = vector.broadcast %c0_i32 : i32 to vector<1x128xi32>
    %29 = arith.cmpi slt, %27, %28 : vector<1x128xi32>
    %c0_i32_2 = arith.constant 0 : i32
    %30 = vector.broadcast %c0_i32_2 : i32 to vector<1x128xi32>
    %31 = arith.cmpi sge, %27, %30 : vector<1x128xi32>
    %c28_i32 = arith.constant 28 : i32
    %32 = vector.broadcast %c28_i32 : i32 to vector<1x128xi32>
    %33 = arith.cmpi slt, %27, %32 : vector<1x128xi32>
    %34 = arith.andi %31, %33 : vector<1x128xi1>
    %35 = arith.ori %29, %34 : vector<1x128xi1>
    %c32_i32 = arith.constant 32 : i32
    %36 = vector.broadcast %c32_i32 : i32 to vector<1x128xi32>
    %37 = arith.cmpi sge, %27, %36 : vector<1x128xi32>
    %c60_i32 = arith.constant 60 : i32
    %38 = vector.broadcast %c60_i32 : i32 to vector<1x128xi32>
    %39 = arith.cmpi slt, %27, %38 : vector<1x128xi32>
    %40 = arith.andi %37, %39 : vector<1x128xi1>
    %41 = arith.ori %35, %40 : vector<1x128xi1>
    %c64_i32 = arith.constant 64 : i32
    %42 = vector.broadcast %c64_i32 : i32 to vector<1x128xi32>
    %43 = arith.cmpi sge, %27, %42 : vector<1x128xi32>
    %c92_i32 = arith.constant 92 : i32
    %44 = vector.broadcast %c92_i32 : i32 to vector<1x128xi32>
    %45 = arith.cmpi slt, %27, %44 : vector<1x128xi32>
    %46 = arith.andi %43, %45 : vector<1x128xi1>
    %47 = arith.ori %41, %46 : vector<1x128xi1>
    %c96_i32 = arith.constant 96 : i32
    %48 = vector.broadcast %c96_i32 : i32 to vector<1x128xi32>
    %49 = arith.cmpi sge, %27, %48 : vector<1x128xi32>
    %c124_i32_3 = arith.constant 124 : i32
    %50 = vector.broadcast %c124_i32_3 : i32 to vector<1x128xi32>
    %51 = arith.cmpi slt, %27, %50 : vector<1x128xi32>
    %52 = arith.andi %49, %51 : vector<1x128xi1>
    %53 = arith.ori %47, %52 : vector<1x128xi1>
    %cst = arith.constant 0.000000e+00 : f32
    %54 = vector.broadcast %cst : f32 to vector<1x128xf32>
    %55 = arith.select %53, %26, %54 : vector<1x128xi1>, vector<1x128xf32>
    %56 = vector.shape_cast %55 : vector<1x128xf32> to vector<1x1x128xf32>
    %cst_4 = arith.constant dense<0.000000e+00> : vector<1xf32>
    %57 = vector.multi_reduction <add>, %56, %cst_4 [1, 2] : vector<1x1x128xf32> to vector<1xf32>
    %58 = vector.shape_cast %57 : vector<1xf32> to vector<1x1x1xf32>
    %59 = vector.extract %58[0, 0, 0] : f32 from vector<1x1x1xf32>
    %60 = arith.mulf %55, %55 : vector<1x128xf32>
    %61 = vector.shape_cast %60 : vector<1x128xf32> to vector<1x1x128xf32>
    %cst_5 = arith.constant dense<0.000000e+00> : vector<1xf32>
    %62 = vector.multi_reduction <add>, %61, %cst_5 [1, 2] : vector<1x1x128xf32> to vector<1xf32>
    %63 = vector.shape_cast %62 : vector<1xf32> to vector<1x1x1xf32>
    %64 = vector.extract %63[0, 0, 0] : f32 from vector<1x1x1xf32>
    %65 = tpu.iota {dimensions = array<i32: 0>} : vector<8x128xi32>
    %66 = tpu.iota {dimensions = array<i32: 1>} : vector<8x128xi32>
    %c0_i32_6 = arith.constant 0 : i32
    %67 = vector.broadcast %c0_i32_6 : i32 to vector<8x128xi32>
    %68 = arith.cmpi eq, %66, %67 : vector<8x128xi32>
    %c1_i32 = arith.constant 1 : i32
    %69 = vector.broadcast %c1_i32 : i32 to vector<8x128xi32>
    %70 = arith.cmpi eq, %66, %69 : vector<8x128xi32>
    %cst_7 = arith.constant 0.000000e+00 : f32
    %71 = vector.broadcast %64 : f32 to vector<8x128xf32>
    %72 = vector.broadcast %cst_7 : f32 to vector<8x128xf32>
    %73 = arith.select %70, %71, %72 : vector<8x128xi1>, vector<8x128xf32>
    %74 = vector.broadcast %59 : f32 to vector<8x128xf32>
    %75 = arith.select %68, %74, %73 : vector<8x128xi1>, vector<8x128xf32>
    %c0_i32_8 = arith.constant 0 : i32
    %76 = vector.broadcast %c0_i32_8 : i32 to vector<8x128xi32>
    %77 = arith.cmpi eq, %65, %76 : vector<8x128xi32>
    %cst_9 = arith.constant 0.000000e+00 : f32
    %78 = vector.broadcast %cst_9 : f32 to vector<8x128xf32>
    %79 = arith.select %77, %75, %78 : vector<8x128xi1>, vector<8x128xf32>
    %c0_10 = arith.constant 0 : index
    %c0_11 = arith.constant 0 : index
    %80 = vector.load %arg3[%c0_10, %c0_11] : memref<8x128xf32, #tpu.memory_space<vmem>>, vector<8x128xf32>
    tpu.vector_store %arg3[%c0_10, %c0_11], %79 {strides = array<i32>} : memref<8x128xf32, #tpu.memory_space<vmem>>, vector<8x128xf32>,
    return
  }
  func.func @transform_0(%arg0: i32) -> i32 {
    %c0_i32 = arith.constant 0 : i32
    %c0_i32_0 = arith.constant 0 : i32
    return %c0_i32 : i32
  }
  func.func @transform_1(%arg0: i32) -> (i32, i32) {
    %c0_i32 = arith.constant 0 : i32
    %c0_i32_0 = arith.constant 0 : i32
    return %arg0, %c0_i32 : i32, i32
  }
  func.func @transform_2(%arg0: i32) -> (i32, i32) {
    %c0_i32 = arith.constant 0 : i32
    %c0_i32_0 = arith.constant 0 : i32
    return %arg0, %c0_i32 : i32, i32
  }
}

module attributes {stable_mosaic.version = 11 : i64} {
  func.func @_normalize_kernel(%arg0: i32, %arg1: memref<8xf32, #tpu.memory_space<smem>>, %arg2: memref<1x128xf32, #tpu.memory_space<vmem>>, %arg3: memref<1x112xf32, #tpu.memory_space<vmem>>) attributes {dimension_semantics = [#tpu.dimension_semantics<parallel>], iteration_bounds = array<i64: 1>, scalar_prefetch = 0 : i64, scratch_operands = 0 : i64, tpu.core_type = #tpu.core_type<tc>, window_params = [{transform_indices = @transform_0, window_bounds = array<i64: 8>}, {transform_indices = @transform_1, window_bounds = array<i64: 1, 128>}, {transform_indices = @transform_2, window_bounds = array<i64: 1, 112>}]} {
    %c0 = arith.constant 0 : index
    %c0_0 = arith.constant 0 : index
    %0 = vector.load %arg2[%c0, %c0_0] : memref<1x128xf32, #tpu.memory_space<vmem>>, vector<1x128xf32>
    %c0_1 = arith.constant 0 : index
    %1 = memref.load %arg1[%c0_1] : memref<8xf32, #tpu.memory_space<smem>>
    %c1 = arith.constant 1 : index
    %2 = memref.load %arg1[%c1] : memref<8xf32, #tpu.memory_space<smem>>
    %c2 = arith.constant 2 : index
    %3 = memref.load %arg1[%c2] : memref<8xf32, #tpu.memory_space<smem>>
    %c3 = arith.constant 3 : index
    %4 = memref.load %arg1[%c3] : memref<8xf32, #tpu.memory_space<smem>>
    %c4 = arith.constant 4 : index
    %5 = memref.load %arg1[%c4] : memref<8xf32, #tpu.memory_space<smem>>
    %c5 = arith.constant 5 : index
    %6 = memref.load %arg1[%c5] : memref<8xf32, #tpu.memory_space<smem>>
    %7 = vector.broadcast %1 : f32 to vector<1x128xf32>
    %8 = arith.mulf %7, %0 : vector<1x128xf32>
    %9 = vector.broadcast %6 : f32 to vector<1x128xf32>
    %10 = arith.addf %8, %9 : vector<1x128xf32>
    %c127_i32 = arith.constant 127 : i32
    %11 = tpu.dynamic_rotate %0 by %c127_i32 dim 1 : vector<1x128xf32>, i32 -> vector<1x128xf32>
    %12 = vector.broadcast %2 : f32 to vector<1x128xf32>
    %13 = arith.mulf %12, %11 : vector<1x128xf32>
    %14 = arith.addf %10, %13 : vector<1x128xf32>
    %c126_i32 = arith.constant 126 : i32
    %15 = tpu.dynamic_rotate %0 by %c126_i32 dim 1 : vector<1x128xf32>, i32 -> vector<1x128xf32>
    %16 = vector.broadcast %3 : f32 to vector<1x128xf32>
    %17 = arith.mulf %16, %15 : vector<1x128xf32>
    %18 = arith.addf %14, %17 : vector<1x128xf32>
    %c125_i32 = arith.constant 125 : i32
    %19 = tpu.dynamic_rotate %0 by %c125_i32 dim 1 : vector<1x128xf32>, i32 -> vector<1x128xf32>
    %20 = vector.broadcast %4 : f32 to vector<1x128xf32>
    %21 = arith.mulf %20, %19 : vector<1x128xf32>
    %22 = arith.addf %18, %21 : vector<1x128xf32>
    %c124_i32 = arith.constant 124 : i32
    %23 = tpu.dynamic_rotate %0 by %c124_i32 dim 1 : vector<1x128xf32>, i32 -> vector<1x128xf32>
    %24 = vector.broadcast %5 : f32 to vector<1x128xf32>
    %25 = arith.mulf %24, %23 : vector<1x128xf32>
    %26 = arith.addf %22, %25 : vector<1x128xf32>
    %c6 = arith.constant 6 : index
    %27 = memref.load %arg1[%c6] : memref<8xf32, #tpu.memory_space<smem>>
    %c7 = arith.constant 7 : index
    %28 = memref.load %arg1[%c7] : memref<8xf32, #tpu.memory_space<smem>>
    %29 = vector.broadcast %27 : f32 to vector<1x128xf32>
    %30 = arith.mulf %26, %29 : vector<1x128xf32>
    %31 = vector.broadcast %28 : f32 to vector<1x128xf32>
    %32 = arith.addf %30, %31 : vector<1x128xf32>
    %33 = vector.extract_strided_slice %32 {offsets = [0, 0], sizes = [1, 28], strides = [1, 1]} : vector<1x128xf32> to vector<1x28xf32>
    %34 = vector.extract_strided_slice %32 {offsets = [0, 32], sizes = [1, 28], strides = [1, 1]} : vector<1x128xf32> to vector<1x28xf32>
    %35 = vector.extract_strided_slice %32 {offsets = [0, 64], sizes = [1, 28], strides = [1, 1]} : vector<1x128xf32> to vector<1x28xf32>
    %36 = vector.extract_strided_slice %32 {offsets = [0, 96], sizes = [1, 28], strides = [1, 1]} : vector<1x128xf32> to vector<1x28xf32>
    %37 = tpu.concatenate %33, %34, %35, %36 in 1 : vector<1x28xf32>, vector<1x28xf32>, vector<1x28xf32>, vector<1x28xf32> -> vector<1x112xf32>
    %c0_2 = arith.constant 0 : index
    %c0_3 = arith.constant 0 : index
    %38 = vector.load %arg3[%c0_2, %c0_3] : memref<1x112xf32, #tpu.memory_space<vmem>>, vector<1x112xf32>
    tpu.vector_store %arg3[%c0_2, %c0_3], %37 {strides = array<i32>} : memref<1x112xf32, #tpu.memory_space<vmem>>, vector<1x112xf32>,
    return
  }
  func.func @transform_0(%arg0: i32) -> i32 {
    %c0_i32 = arith.constant 0 : i32
    %c0_i32_0 = arith.constant 0 : i32
    return %c0_i32 : i32
  }
  func.func @transform_1(%arg0: i32) -> (i32, i32) {
    %c0_i32 = arith.constant 0 : i32
    %c0_i32_0 = arith.constant 0 : i32
    return %arg0, %c0_i32 : i32, i32
  }
  func.func @transform_2(%arg0: i32) -> (i32, i32) {
    %c0_i32 = arith.constant 0 : i32
    %c0_i32_0 = arith.constant 0 : i32
    return %arg0, %c0_i32 : i32, i32
  }
}

</mosaic_0001>

<llo_original>
// kernel: squeeze.9
$region0: #{squeeze.9}
  %s0 = inlined_call_operand.vmem [shape: f32[4,32], index: 0, kind: input, shape index: {}]
  %s1 = inlined_call_operand.vmem [shape: f32[1,128], index: 1, kind: output, shape index: {}]
  $region1: #{squeeze.9} parent=0
    #allocation0 [shape = 'u8[4096]{0}', space=vmem, size = 0x1000, scoped, tag = 'scoped mem for output reshape']
    #allocation1 [shape = 'u8[4096]{0}', space=vmem, size = 0x1000, scoped, tag = 'scoped mem for input reshape']
    %s3 = sshll.u32 1, 4
    %s4 = ssub.s32 %s3, 1
    %v5 = vld [vmem:[%s0] sm:%s4]
    %6 = vst [vmem:[#allocation1] sm:%s4] %v5
    %v7 = vld [vmem:[#allocation1] sm:$0x1]
    %vm8 = vcmask 261120
    %9 = vst.msk [vmem:[#allocation0] sm:$0x1] %vm8, %v7
    %s10 = scalar_lea.vmem [#allocation1], 3
    %v11 = vld [vmem:[%s10] sm:$0x1]
    %12 = vrot.lane.b32.xlu0 %v11, 96
    %v13 = vpop.permute.xlu0 %12
    %vm14 = vcmask 1048320
    %15 = vst.msk [vmem:[#allocation0] sm:$0x1] %vm14, %v13
    %s16 = scalar_lea.vmem [#allocation1], 2
    %v17 = vld [vmem:[%s16] sm:$0x1]
    %18 = vrot.lane.b32.xlu0 %v17, 64
    %v19 = vpop.permute.xlu0 %18
    %vm20 = vcmask 785920
    %21 = vst.msk [vmem:[#allocation0] sm:$0x1] %vm20, %v19
    %s22 = scalar_lea.vmem [#allocation1], 1
    %v23 = vld [vmem:[%s22] sm:$0x1]
    %24 = vrot.lane.b32.xlu0 %v23, 32
    %v25 = vpop.permute.xlu0 %24
    %vm26 = vcmask 523520
    %27 = vst.msk [vmem:[#allocation0] sm:$0x1] %vm26, %v25
    %s29 = sshll.u32 1, 1
    %s30 = ssub.s32 %s29, 1
    %v32 = vld [vmem:[#allocation0] sm:%s30]
    %s33 = sshll.u32 1, 1
    %s34 = ssub.s32 %s33, 1
    %35 = vst [vmem:[%s1] sm:%s34] %v32

// kernel: _model_forward_impl.3
$region0: #{_model_forward_impl.3}
  #allocation0 [shape = 'u32[]', space=smem, size = 0x4, offset = 0x4, fixed_abs, tag = 'smem constant byte address 0x4 - core index']
  #allocation1 [shape = 'u32[144,128]{1,0:T(1,128)}', space=vmem, size = 0x12000, scoped, tag = 'internal scratch']
  %s0 = inlined_call_operand.vmem [shape: f32[8], index: 0, kind: input, shape index: {}]
  %s1 = inlined_call_operand.vmem [shape: f32[1,128], index: 1, kind: input, shape index: {}]
  %s2 = inlined_call_operand.vmem [shape: f32[1,112], index: 2, kind: output, shape index: {}]
  %s3 = sld [smem:[#allocation0]]
  $region22: #{_model_forward_impl.3} parent=0
    _
  %s5 = ssub.s32 1, %s3
  %s6 = scalar_select 0, %s5, %s3
  $region1: #{_model_forward_impl.3} parent=0
    #allocation2 [shape = 'u8[512]{0}', space=smem, size = 0x200, scoped, tag = 'input window, operand 0, single buffered']
    #allocation3 [shape = 's32[1]{0}', space=sflag, size = 0x4, scoped, tag = 'scoped memory for _model_forward_impl.3']
    %7 = vsyncpa [#allocation3], 0
    // Predicated region
    $region2: #{_model_forward_impl.3} parent=1 // pred_check
      _
    $region3: #{_model_forward_impl.3} parent=1 // pred_check_branch
      %9 = sbr.rel (0) target = $region5
    $region4: #{_model_forward_impl.3} parent=1 // pred_region
      %s11 = ssub.s32 16, 16
      %12 = vsyncadd [#allocation3], %s11
      %s14 = sshll.u32 %s0, 4
      %s15 = int_to_ptr.vmem [resolvable:$true] %s14
      %17 = dma.vmem_to_smem %s15, 16, [#allocation2], [#allocation3]
    $region5: #{_model_forward_impl.3} parent=1 // pred_fallthru
      _
    // Predicated region
    $region6: #{_model_forward_impl.3} parent=1 // pred_check
      _
    $region7: #{_model_forward_impl.3} parent=1 // pred_check_branch
      %19 = sbr.rel (0) target = $region9
    $region8: #{_model_forward_impl.3} parent=1 // pred_region
      _
    $region9: #{_model_forward_impl.3} parent=1 // pred_fallthru
      _
    // Predicated region
    $region10: #{_model_forward_impl.3} parent=1 // pred_check
      _
    $region11: #{_model_forward_impl.3} parent=1 // pred_check_branch
      %21 = sbr.rel (0) target = $region13
    $region12: #{_model_forward_impl.3} parent=1 // pred_region
      %22 = dma.done [#allocation3], 16
    $region13: #{_model_forward_impl.3} parent=1 // pred_fallthru
      _
    %23 = sfence
    %v24 = vld [vmem:[%s1] sm:$0x1]
    %s25 = sld [smem:[#allocation2]]
    %s26 = sld [smem:[#allocation2 + $0x1]]
    %s27 = sld [smem:[#allocation2 + $0x2]]
    %s28 = sld [smem:[#allocation2 + $0x3]]
    %s29 = sld [smem:[#allocation2 + $0x4]]
    %s30 = sld [smem:[#allocation2 + $0x5]]
    %v31 = vstv %s25
    %v32 = vmul.f32 %v31, %v24
    %v33 = vstv %s30
    %v34 = vadd.f32 %v32, %v33
    %35 = vrot.lane.b32.xlu0 %v24, 127
    %v36 = vpop.permute.xlu0 %35
    %v37 = vstv %s26
    %v38 = vmul.f32 %v37, %v36
    %v39 = vadd.f32 %v34, %v38
    %40 = vrot.lane.b32.xlu0 %v24, 126
    %v41 = vpop.permute.xlu0 %40
    %v42 = vstv %s27
    %v43 = vmul.f32 %v42, %v41
    %v44 = vadd.f32 %v39, %v43
    %45 = vrot.lane.b32.xlu0 %v24, 125
    %v46 = vpop.permute.xlu0 %45
    %v47 = vstv %s28
    %v48 = vmul.f32 %v47, %v46
    %v49 = vadd.f32 %v44, %v48
    %50 = vrot.lane.b32.xlu0 %v24, 124
    %v51 = vpop.permute.xlu0 %50
    %v52 = vstv %s29
    %v53 = vmul.f32 %v52, %v51
    %v54 = vadd.f32 %v49, %v53
    %s55 = sld [smem:[#allocation2 + $0x6]]
    %s56 = sld [smem:[#allocation2 + $0x7]]
    %v57 = vstv %s55
    %v58 = vmul.f32 %v54, %v57
    %v59 = vstv %s56
    %v60 = vadd.f32 %v58, %v59
    %v62 = vlaneseq
    %v63 = vshrl.u32 %v62, 7
    %v64 = vsub.s32 0, %v63
    %v65 = vrot.slane %v60, %v64
    %66 = vrot.lane.b32.xlu0 %v65, 124
    %v67 = vpop.permute.xlu0 %66
    %69 = vrot.lane.b32.xlu0 %v65, 120
    %v70 = vpop.permute.xlu0 %69
    %72 = vrot.lane.b32.xlu0 %v65, 116
    %v73 = vpop.permute.xlu0 %72
    %vm75 = vcmask 228352
    %v76 = vsel %vm75, %v60, %v67
    %vm77 = vcmask 457728
    %v78 = vsel %vm77, %v76, %v70
    %vm79 = vcmask 687104
    %v80 = vsel %vm79, %v78, %v73
    %vm81 = vcmask 909312
    %82 = vst.msk [vmem:[%s2] sm:$0x1] %vm81, %v80
    // Predicated region
    $region14: #{_model_forward_impl.3} parent=1 // pred_check
      _
    $region15: #{_model_forward_impl.3} parent=1 // pred_check_branch
      %84 = sbr.rel (0) target = $region17
    $region16: #{_model_forward_impl.3} parent=1 // pred_region
      _
    $region17: #{_model_forward_impl.3} parent=1 // pred_fallthru
      _
    // Predicated region
    $region18: #{_model_forward_impl.3} parent=1 // pred_check
      _
    $region19: #{_model_forward_impl.3} parent=1 // pred_check_branch
      %86 = sbr.rel (0) target = $region21
    $region20: #{_model_forward_impl.3} parent=1 // pred_region
      _
    $region21: #{_model_forward_impl.3} parent=1 // pred_fallthru
      _
    %87 = vsyncpa [#allocation3], 1

// kernel: _model_forward_impl.2
$region0: #{_model_forward_impl.2}
  #allocation0 [shape = 'u32[]', space=smem, size = 0x4, offset = 0x4, fixed_abs, tag = 'smem constant byte address 0x4 - core index']
  #allocation1 [shape = 'u32[144,128]{1,0:T(1,128)}', space=vmem, size = 0x12000, scoped, tag = 'internal scratch']
  %s0 = inlined_call_operand.vmem [shape: f32[8], index: 0, kind: input, shape index: {}]
  %s1 = inlined_call_operand.vmem [shape: f32[1,128], index: 1, kind: input, shape index: {}]
  %s2 = inlined_call_operand.vmem [shape: f32[8,128], index: 2, kind: output, shape index: {}]
  %s3 = sld [smem:[#allocation0]]
  $region22: #{_model_forward_impl.2} parent=0
    _
  %s5 = ssub.s32 1, %s3
  %s6 = scalar_select 0, %s5, %s3
  $region1: #{_model_forward_impl.2} parent=0
    #allocation2 [shape = 'u8[512]{0}', space=smem, size = 0x200, scoped, tag = 'input window, operand 0, single buffered']
    #allocation3 [shape = 's32[1]{0}', space=sflag, size = 0x4, scoped, tag = 'scoped memory for _model_forward_impl.2']
    %7 = vsyncpa [#allocation3], 0
    // Predicated region
    $region2: #{_model_forward_impl.2} parent=1 // pred_check
      _
    $region3: #{_model_forward_impl.2} parent=1 // pred_check_branch
      %9 = sbr.rel (0) target = $region5
    $region4: #{_model_forward_impl.2} parent=1 // pred_region
      %s11 = ssub.s32 16, 16
      %12 = vsyncadd [#allocation3], %s11
      %s14 = sshll.u32 %s0, 4
      %s15 = int_to_ptr.vmem [resolvable:$true] %s14
      %17 = dma.vmem_to_smem %s15, 16, [#allocation2], [#allocation3]
    $region5: #{_model_forward_impl.2} parent=1 // pred_fallthru
      _
    // Predicated region
    $region6: #{_model_forward_impl.2} parent=1 // pred_check
      _
    $region7: #{_model_forward_impl.2} parent=1 // pred_check_branch
      %19 = sbr.rel (0) target = $region9
    $region8: #{_model_forward_impl.2} parent=1 // pred_region
      _
    $region9: #{_model_forward_impl.2} parent=1 // pred_fallthru
      _
    // Predicated region
    $region10: #{_model_forward_impl.2} parent=1 // pred_check
      _
    $region11: #{_model_forward_impl.2} parent=1 // pred_check_branch
      %21 = sbr.rel (0) target = $region13
    $region12: #{_model_forward_impl.2} parent=1 // pred_region
      %22 = dma.done [#allocation3], 16
    $region13: #{_model_forward_impl.2} parent=1 // pred_fallthru
      _
    %23 = sfence
    %v24 = vld [vmem:[%s1] sm:$0x1]
    %s25 = sld [smem:[#allocation2]]
    %s26 = sld [smem:[#allocation2 + $0x1]]
    %s27 = sld [smem:[#allocation2 + $0x2]]
    %s28 = sld [smem:[#allocation2 + $0x3]]
    %s29 = sld [smem:[#allocation2 + $0x4]]
    %s30 = sld [smem:[#allocation2 + $0x5]]
    %v31 = vstv %s25
    %v32 = vmul.f32 %v31, %v24
    %v33 = vstv %s30
    %v34 = vadd.f32 %v32, %v33
    %35 = vrot.lane.b32.xlu0 %v24, 127
    %v36 = vpop.permute.xlu0 %35
    %v37 = vstv %s26
    %v38 = vmul.f32 %v37, %v36
    %v39 = vadd.f32 %v34, %v38
    %40 = vrot.lane.b32.xlu0 %v24, 126
    %v41 = vpop.permute.xlu0 %40
    %v42 = vstv %s27
    %v43 = vmul.f32 %v42, %v41
    %v44 = vadd.f32 %v39, %v43
    %45 = vrot.lane.b32.xlu0 %v24, 125
    %v46 = vpop.permute.xlu0 %45
    %v47 = vstv %s28
    %v48 = vmul.f32 %v47, %v46
    %v49 = vadd.f32 %v44, %v48
    %50 = vrot.lane.b32.xlu0 %v24, 124
    %v51 = vpop.permute.xlu0 %50
    %v52 = vstv %s29
    %v53 = vmul.f32 %v52, %v51
    %v54 = vadd.f32 %v49, %v53
    %v55 = vlaneseq
    %v56 = vand.u32 %v55, 127
    %vm57 = vcmp.lt.s32.totalorder %v56, 0
    %vm58 = vcmp.ge.s32.totalorder %v56, 0
    %vm59 = vcmp.lt.s32.totalorder %v56, 28
    %vm60 = vmand %vm58, %vm59
    %vm61 = vmor %vm57, %vm60
    %vm62 = vcmp.ge.s32.totalorder %v56, 32
    %vm63 = vcmp.lt.s32.totalorder %v56, 60
    %vm64 = vmand %vm62, %vm63
    %vm65 = vmor %vm61, %vm64
    %vm66 = vcmp.ge.s32.totalorder %v56, 64
    %vm67 = vcmp.lt.s32.totalorder %v56, 92
    %vm68 = vmand %vm66, %vm67
    %vm69 = vmor %vm65, %vm68
    %vm70 = vcmp.ge.s32.totalorder %v56, 96
    %vm71 = vcmp.lt.s32.totalorder %v56, 124
    %vm72 = vmand %vm70, %vm71
    %vm73 = vmor %vm69, %vm72
    %v74 = vsel %vm73, %v54, 0.0
    %vm75 = vcmask 1040384
    %v76 = vsel %vm75, %v74, 0.0
    %77 = vadd.xlane.f32.xlu0 %v76
    %v78 = vpop.xlane.xlu0 %77
    %v79 = vrot.slane %v78, 4
    %v80 = vadd.f32 %v78, %v79
    %v81 = vrot.slane %v80, 2
    %v82 = vadd.f32 %v80, %v81
    %v83 = vrot.slane %v82, 1
    %v84 = vadd.f32 %v82, %v83
    %s85 = vtos %v84
    %v86 = vmul.f32 %v74, %v74
    %v87 = vsel %vm75, %v86, 0.0
    %88 = vadd.xlane.f32.xlu0 %v87
    %v89 = vpop.xlane.xlu0 %88
    %v90 = vrot.slane %v89, 4
    %v91 = vadd.f32 %v89, %v90
    %v92 = vrot.slane %v91, 2
    %v93 = vadd.f32 %v91, %v92
    %v94 = vrot.slane %v93, 1
    %v95 = vadd.f32 %v93, %v94
    %s96 = vtos %v95
    %v97 = vlaneseq
    %v98 = vshrl.u32 %v97, 7
    %vm99 = vcmp.eq.s32.totalorder %v56, 0
    %vm100 = vcmp.eq.s32.totalorder %v56, 1
    %v101 = vstv %s96
    %v102 = vsel %vm100, %v101, 0.0
    %v103 = vstv %s85
    %v104 = vsel %vm99, %v103, %v102
    %vm105 = vcmp.eq.s32.totalorder %v98, 0
    %v106 = vsel %vm105, %v104, 0.0
    %107 = vst [vmem:[%s2] sm:$0xff] %v106
    // Predicated region
    $region14: #{_model_forward_impl.2} parent=1 // pred_check
      _
    $region15: #{_model_forward_impl.2} parent=1 // pred_check_branch
      %109 = sbr.rel (0) target = $region17
    $region16: #{_model_forward_impl.2} parent=1 // pred_region
      _
    $region17: #{_model_forward_impl.2} parent=1 // pred_fallthru
      _
    // Predicated region
    $region18: #{_model_forward_impl.2} parent=1 // pred_check
      _
    $region19: #{_model_forward_impl.2} parent=1 // pred_check_branch
      %111 = sbr.rel (0) target = $region21
    $region20: #{_model_forward_impl.2} parent=1 // pred_region
      _
    $region21: #{_model_forward_impl.2} parent=1 // pred_fallthru
      _
    %112 = vsyncpa [#allocation3], 1

</llo_original>
